<compile_context>
chip_gen: v5e
topology: v5e:2x2
jax: 0.10.0
libtpu: 0.0.40
codegen_flags: <defaults>
</compile_context>

<pallas_src>
import jax
import jax.numpy as jnp
import numpy as np
from jax.experimental import pallas as pl
from jax.experimental.pallas import tpu as pltpu


def _fc_repeat_kernel(x_ref, wt_ref, b_ref, o_ref):
    # x_ref : (TB, 3)   input rows (input concat folded into the weight)
    # wt_ref: (3, 24)   effective weight, already replicated for the output concat
    # b_ref : (1, 24)   fc bias, replicated for the output concat
    # o_ref : (TB, 24)  output = [v1 | v1 | v1]  -- single full-tile store
    o_ref[...] = (
        jnp.dot(x_ref[...], wt_ref[...], preferred_element_type=jnp.float32)
        + b_ref[...]
    )


def _select_tile(B, tb):
    """Pick the batch tile TB (8-aligned) and implicitly the grid length cdiv(B, TB)."""
    tb = max(8, (tb // 8) * 8)
    if B > tb:
        return tb
    # B fits in one tile.  For a sizeable batch, split into ~2 grid steps so the
    # "parallel" grid axis can be sharded across both TensorCores on v7x.
    if B >= 1024:
        half = pl.cdiv(B, 2)
        return pl.cdiv(half, 8) * 8
    # Tiny batch: a single block whose sublane dim equals the full array dim is
    # always layout-legal, regardless of 8-divisibility.
    return B


def model_forward(x, weight, bias, *, tb=16384):
    """x: (B, 3) f32, weight: (8, 9) f32, bias: (8,) f32 -> (B, 24) f32."""
    B = x.shape[0]
    x = x.astype(jnp.float32)
    weight = weight.astype(jnp.float32)
    bias = bias.astype(jnp.float32)

    # Fold cat([x, x, x], dim=1) into the weight (column-sum of the three 3-wide
    # slices), transpose to (K=3, N=8), then fold the OUTPUT cat by tiling to N=24.
    w_eff_t = (weight[:, 0:3] + weight[:, 3:6] + weight[:, 6:9]).T      # (3, 8)
    w_rep = jnp.tile(w_eff_t, (1, 3))                                   # (3, 24)
    b_rep = jnp.tile(bias.reshape(1, 8), (1, 3))                        # (1, 24)

    TB = _select_tile(B, tb)
    grid = (pl.cdiv(B, TB),)

    cost = pl.CostEstimate(
        flops=2 * B * 3 * 24,
        transcendentals=0,
        bytes_accessed=B * (3 + 24) * 4 + (3 * 24 + 24) * 4,
    )

    out = pl.pallas_call(
        _fc_repeat_kernel,
        out_shape=jax.ShapeDtypeStruct((B, 24), jnp.float32),
        grid=grid,
        in_specs=[
            pl.BlockSpec((TB, 3), lambda i: (i, 0)),    # streamed row tiles
            pl.BlockSpec((3, 24), lambda i: (0, 0)),    # resident replicated weight
            pl.BlockSpec((1, 24), lambda i: (0, 0)),    # resident replicated bias
        ],
        out_specs=pl.BlockSpec((TB, 24), lambda i: (i, 0)),
        compiler_params=pltpu.CompilerParams(
            dimension_semantics=("parallel",),
            vmem_limit_bytes=48 * 1024 * 1024,
        ),
        cost_estimate=cost,
    )(x, w_rep, b_rep)

    return out


def _reference(x, weight, bias):
    # Pure-JAX reference mirroring the (corrected) PyTorch forward.
    b1 = jnp.concatenate([x, x, x], axis=1)
    v1 = b1 @ weight.T + bias
    return jnp.concatenate([v1, v1, v1], axis=1)


if __name__ == "__main__":
    key = jax.random.PRNGKey(0)
    kx, kw, kb, kx2, kx3 = jax.random.split(key, 5)

    # Deterministic parameter init (PyTorch-Linear-style uniform bounds).
    in_features, out_features = 9, 8
    bound = 1.0 / np.sqrt(in_features)
    weight = jax.random.uniform(kw, (out_features, in_features),
                                minval=-bound, maxval=bound, dtype=jnp.float32)
    bias = jax.random.uniform(kb, (out_features,),
                              minval=-bound, maxval=bound, dtype=jnp.float32)

    # Case 1: the module's declared shape, x1 = randn(1, 3) (single tiny block).
    B1 = 1
    x1 = jax.random.normal(kx, (B1, 3), dtype=jnp.float32)
    out1 = jax.block_until_ready(model_forward(x1, weight, bias))
    ref1 = _reference(x1, weight, bias)
    assert out1.shape == (B1, 24), out1.shape
    np.testing.assert_allclose(np.asarray(out1), np.asarray(ref1),
                               rtol=1e-5, atol=1e-5)

    # Case 2: ragged batch with a small tile to exercise the multi-step grid with
    # a masked (unpadded) last block.  (tb=256 is for testing only, not shipping.)
    B2 = 1000
    x2 = jax.random.normal(kx2, (B2, 3), dtype=jnp.float32)
    out2 = jax.block_until_ready(model_forward(x2, weight, bias, tb=256))
    ref2 = _reference(x2, weight, bias)
    assert out2.shape == (B2, 24), out2.shape
    np.testing.assert_allclose(np.asarray(out2), np.asarray(ref2),
                               rtol=1e-5, atol=1e-5)

    # Case 3: batch that fits one default tile but is split into 2 grid steps
    # (megacore path on v7x), with a ragged second block.
    B3 = 3000
    x3 = jax.random.normal(kx3, (B3, 3), dtype=jnp.float32)
    out3 = jax.block_until_ready(model_forward(x3, weight, bias))
    ref3 = _reference(x3, weight, bias)
    assert out3.shape == (B3, 24), out3.shape
    np.testing.assert_allclose(np.asarray(out3), np.asarray(ref3),
                               rtol=1e-5, atol=1e-5)

    print("KERNEL_OK")
</pallas_src>

<mosaic_0001>
module attributes {stable_mosaic.version = 11 : i64} {
  func.func @_fc_repeat_kernel(%arg0: i32, %arg1: memref<1x3xf32, #tpu.memory_space<vmem>>, %arg2: memref<3x24xf32, #tpu.memory_space<vmem>>, %arg3: memref<1x24xf32, #tpu.memory_space<vmem>>, %arg4: memref<1x24xf32, #tpu.memory_space<vmem>>) attributes {dimension_semantics = [#tpu.dimension_semantics<parallel>], iteration_bounds = array<i64: 1>, scalar_prefetch = 0 : i64, scratch_operands = 0 : i64, tpu.core_type = #tpu.core_type<tc>, window_params = [{transform_indices = @transform_0, window_bounds = array<i64: 1, 3>}, {pipeline_mode = #tpu.pipeline_mode<synchronous>, transform_indices = @transform_1, window_bounds = array<i64: 3, 24>}, {pipeline_mode = #tpu.pipeline_mode<synchronous>, transform_indices = @transform_2, window_bounds = array<i64: 1, 24>}, {transform_indices = @transform_3, window_bounds = array<i64: 1, 24>}]} {
    %c0 = arith.constant 0 : index
    %c0_0 = arith.constant 0 : index
    %0 = vector.load %arg1[%c0, %c0_0] : memref<1x3xf32, #tpu.memory_space<vmem>>, vector<1x3xf32>
    %c0_1 = arith.constant 0 : index
    %c0_2 = arith.constant 0 : index
    %1 = vector.load %arg2[%c0_1, %c0_2] : memref<3x24xf32, #tpu.memory_space<vmem>>, vector<3x24xf32>
    %cst = arith.constant dense<0.000000e+00> : vector<1x24xf32>
    %2 = tpu.matmul %0, %1, %cst {dimension_numbers = #tpu.dot_dimension_numbers<[1], [0], [0], [1], [0, 0, 1, 1], [], []>} : vector<1x3xf32>, vector<3x24xf32>, vector<1x24xf32> -> vector<1x24xf32>
    %c0_3 = arith.constant 0 : index
    %c0_4 = arith.constant 0 : index
    %3 = vector.load %arg3[%c0_3, %c0_4] : memref<1x24xf32, #tpu.memory_space<vmem>>, vector<1x24xf32>
    %4 = arith.addf %2, %3 : vector<1x24xf32>
    %c0_5 = arith.constant 0 : index
    %c0_6 = arith.constant 0 : index
    %5 = vector.load %arg4[%c0_5, %c0_6] : memref<1x24xf32, #tpu.memory_space<vmem>>, vector<1x24xf32>
    tpu.vector_store %arg4[%c0_5, %c0_6], %4 {strides = array<i32>} : memref<1x24xf32, #tpu.memory_space<vmem>>, vector<1x24xf32>,
    return
  }
  func.func @transform_0(%arg0: i32) -> (i32, i32) {
    %c0_i32 = arith.constant 0 : i32
    %c0_i32_0 = arith.constant 0 : i32
    return %arg0, %c0_i32 : i32, i32
  }
  func.func @transform_1(%arg0: i32) -> (i32, i32) {
    %c0_i32 = arith.constant 0 : i32
    %c0_i32_0 = arith.constant 0 : i32
    %c0_i32_1 = arith.constant 0 : i32
    return %c0_i32, %c0_i32_0 : i32, i32
  }
  func.func @transform_2(%arg0: i32) -> (i32, i32) {
    %c0_i32 = arith.constant 0 : i32
    %c0_i32_0 = arith.constant 0 : i32
    %c0_i32_1 = arith.constant 0 : i32
    return %c0_i32, %c0_i32_0 : i32, i32
  }
  func.func @transform_3(%arg0: i32) -> (i32, i32) {
    %c0_i32 = arith.constant 0 : i32
    %c0_i32_0 = arith.constant 0 : i32
    return %arg0, %c0_i32 : i32, i32
  }
}

</mosaic_0001>

<llo_original>
// kernel: tpu_custom_call.1
$region0: #{tpu_custom_call.1}
  #allocation0 [shape = 'u32[]', space=smem, size = 0x4, offset = 0x4, fixed_abs, tag = 'smem constant byte address 0x4 - core index']
  #allocation1 [shape = 'u32[72,128]{1,0:T(1,128)}', space=vmem, size = 0x9000, scoped, tag = 'internal scratch']
  %s0 = inlined_call_operand.hbm [shape: f32[1,3], index: 0, kind: input, shape index: {}]
  %s1 = inlined_call_operand.hbm [shape: f32[3,24], index: 1, kind: input, shape index: {}]
  %s2 = inlined_call_operand.vmem [shape: f32[1,24], index: 2, kind: input, shape index: {}]
  %s3 = inlined_call_operand.hbm [shape: f32[1,24], index: 3, kind: output, shape index: {}]
  %s4 = sld [smem:[#allocation0]]
  $region30: #{tpu_custom_call.1} parent=0
    _
  %s6 = ssub.s32 1, %s4
  %s7 = scalar_select 0, %s6, %s4
  $region1: #{tpu_custom_call.1} parent=0
    #allocation2 [shape = 'u8[512]{0}', space=vmem, size = 0x400, scoped, tag = 'input window, operand 0, single buffered']
    #allocation3 [shape = 's32[1]{0}', space=sflag, size = 0x4, scoped, tag = 'scoped memory for tpu_custom_call.1']
    #allocation4 [shape = 's32[1]{0}', space=sflag, size = 0x4, scoped, tag = 'scoped memory for tpu_custom_call.1']
    #allocation5 [shape = 'u8[2048]{0}', space=vmem, size = 0x800, scoped, tag = 'input window, operand 1, single buffered']
    #allocation6 [shape = 's32[1]{0}', space=sflag, size = 0x4, scoped, tag = 'scoped memory for tpu_custom_call.1']
    #allocation7 [shape = 'u8[512]{0}', space=vmem, size = 0x400, scoped, tag = 'output window, operand 0, single buffered']
    %8 = vsyncpa [#allocation3], 0
    %9 = vsyncpa [#allocation6], 0
    %10 = vsyncpa [#allocation4], 0
    // Predicated region
    $region2: #{tpu_custom_call.1} parent=1 // pred_check
      _
    $region3: #{tpu_custom_call.1} parent=1 // pred_check_branch
      %12 = sbr.rel (0) target = $region5
    $region4: #{tpu_custom_call.1} parent=1 // pred_region
      %14 = vsyncadd [#allocation3], 0
      %s16 = sshll.u32 %s0, 4
      %s17 = int_to_ptr.hbm [resolvable:$true] %s16
      %s18 = sshll.u32 [#allocation2], 4
      %s19 = int_to_ptr.vmem [resolvable:$true] %s18
      %21 = dma.hbm_to_vmem [thread:$0]  %s17, 16, %s19, [#allocation3]
    $region5: #{tpu_custom_call.1} parent=1 // pred_fallthru
      _
    // Predicated region
    $region6: #{tpu_custom_call.1} parent=1 // pred_check
      _
    $region7: #{tpu_custom_call.1} parent=1 // pred_check_branch
      %23 = sbr.rel (0) target = $region9
    $region8: #{tpu_custom_call.1} parent=1 // pred_region
      %25 = vsyncadd [#allocation6], 0
      %s27 = sshll.u32 %s1, 4
      %s28 = int_to_ptr.hbm [resolvable:$true] %s27
      %s29 = sshll.u32 [#allocation5], 4
      %s30 = int_to_ptr.vmem [resolvable:$true] %s29
      %32 = dma.hbm_to_vmem [thread:$0]  %s28, 64, %s30, [#allocation6]
    $region9: #{tpu_custom_call.1} parent=1 // pred_fallthru
      _
    // Predicated region
    $region10: #{tpu_custom_call.1} parent=1 // pred_check
      _
    $region11: #{tpu_custom_call.1} parent=1 // pred_check_branch
      %34 = sbr.rel (0) target = $region13
    $region12: #{tpu_custom_call.1} parent=1 // pred_region
      _
    $region13: #{tpu_custom_call.1} parent=1 // pred_fallthru
      _
    // Predicated region
    $region14: #{tpu_custom_call.1} parent=1 // pred_check
      _
    $region15: #{tpu_custom_call.1} parent=1 // pred_check_branch
      %36 = sbr.rel (0) target = $region17
    $region16: #{tpu_custom_call.1} parent=1 // pred_region
      %38 = dma.done [#allocation3], 16
    $region17: #{tpu_custom_call.1} parent=1 // pred_fallthru
      _
    // Predicated region
    $region18: #{tpu_custom_call.1} parent=1 // pred_check
      _
    $region19: #{tpu_custom_call.1} parent=1 // pred_check_branch
      %40 = sbr.rel (0) target = $region21
    $region20: #{tpu_custom_call.1} parent=1 // pred_region
      %42 = dma.done [#allocation6], 64
    $region21: #{tpu_custom_call.1} parent=1 // pred_fallthru
      _
    %v43 = vld [vmem:[#allocation2] sm:$0x1]
    %v44 = vld [vmem:[#allocation5] sm:$0x7]
    %v45 = vld [vmem:[%s2] sm:$0x1]
    %vm46 = vcmask 23552
    %v48 = vsel %vm46, %v43, 0
    %vm50 = vcmask 1042432
    %v52 = vsel %vm50, %v44, 0
    %54 = vmatpush.msra.mxu0 0.0
    %55 = vmatpush.msra.mxu0 0.0
    %56 = vmatpush.msra.mxu0 0.0
    %57 = vmatpush.msra.mxu0 0.0
    %58 = vmatpush.msra.mxu0 0.0
    %59 = vmatpush.msra.mxu0 0.0
    %60 = vmatpush.msra.mxu0 0.0
    %61 = vmatpush.msra.mxu0 0.0
    %62 = vmatpush.msra.mxu0 0.0
    %63 = vmatpush.msra.mxu0 0.0
    %64 = vmatpush.msra.mxu0 0.0
    %65 = vmatpush.msra.mxu0 0.0
    %66 = vmatpush.msra.mxu0 0.0
    %67 = vmatpush.msra.mxu0 0.0
    %68 = vmatpush.msra.mxu0 0.0
    %69 = vmatpush.msra.mxu0 %v52
    %70 = vmatmul.f32.gmra.mxu0 %v48
    %v71 = vpop.f32.mrf.mxu0
    %v72 = vadd.f32 %v45, %v71
    %73 = vdwg.mxu0
    %vm74 = vcmask 188416
    %75 = vst.msk [vmem:[#allocation7] sm:$0x1] %vm74, %v72
    // Predicated region
    $region22: #{tpu_custom_call.1} parent=1 // pred_check
      _
    $region23: #{tpu_custom_call.1} parent=1 // pred_check_branch
      %77 = sbr.rel (0) target = $region25
    $region24: #{tpu_custom_call.1} parent=1 // pred_region
      %79 = vsyncadd [#allocation4], 0
      %s81 = sshll.u32 [#allocation7], 4
      %s82 = int_to_ptr.vmem [resolvable:$true] %s81
      %s83 = sshll.u32 %s3, 4
      %s84 = int_to_ptr.hbm [resolvable:$true] %s83
      %86 = dma.vmem_to_hbm [thread:$0]  %s82, 16, %s84, [#allocation4]
    $region25: #{tpu_custom_call.1} parent=1 // pred_fallthru
      _
    // Predicated region
    $region26: #{tpu_custom_call.1} parent=1 // pred_check
      _
    $region27: #{tpu_custom_call.1} parent=1 // pred_check_branch
      %88 = sbr.rel (0) target = $region29
    $region28: #{tpu_custom_call.1} parent=1 // pred_region
      %90 = dma.done [#allocation4], 16
    $region29: #{tpu_custom_call.1} parent=1 // pred_fallthru
      _
    %91 = vsyncpa [#allocation3], 1
    %92 = vsyncpa [#allocation6], 1
    %93 = vsyncpa [#allocation4], 1

</llo_original>
